<compile_context>
chip_gen: v6e
topology: v6e:2x2x1
jax: 0.10.0
libtpu: 0.0.40
codegen_flags: <defaults>
</compile_context>

<pallas_src>
import jax
import jax.numpy as jnp
from jax.experimental import pallas as pl
from jax.experimental.pallas import tpu as pltpu


# ---------------------------------------------------------------------------
# Fused SE kernel: one batch element per grid step.
#   x_ref : (1, C, HW)   input slab (channels x flattened spatial)
#   w1_ref: (Cr, C)      l1 weight, PyTorch Linear layout (out, in), no bias
#   w2_ref: (C, Cr)      l2 weight, PyTorch Linear layout (out, in), no bias
#   o_ref : (1, C, HW)   output slab
# ---------------------------------------------------------------------------
def _se_kernel(x_ref, w1_ref, w2_ref, o_ref):
    x = x_ref[0].astype(jnp.float32)                        # (C, HW)

    # AdaptiveAvgPool2d(1): per-channel spatial mean -> column vector (C, 1).
    m = jnp.mean(x, axis=1, keepdims=True)                  # (C, 1)

    # l1 (Linear c -> c//r, bias=False) + ReLU.  y = W1 @ m  == (m^T @ W1^T)^T
    h = jnp.dot(w1_ref[...], m, preferred_element_type=jnp.float32)   # (Cr, 1)
    h = jnp.maximum(h, 0.0)

    # l2 (Linear c//r -> c, bias=False) + Sigmoid.
    s = jax.nn.sigmoid(
        jnp.dot(w2_ref[...], h, preferred_element_type=jnp.float32))  # (C, 1)

    # Channel-wise rescale, broadcast (C, 1) over the lane (spatial) axis.
    o_ref[0] = (x * s).astype(o_ref.dtype)


def se_forward(x_nchw, w1, w2):
    """SE forward.  x_nchw: (B, C, H, W); w1: (C//r, C); w2: (C, C//r)."""
    B, C, H, W = x_nchw.shape
    Cr = w1.shape[0]
    HW = H * W
    x3 = x_nchw.reshape(B, C, HW)                           # free reshape, NCHW kept

    out = pl.pallas_call(
        _se_kernel,
        out_shape=jax.ShapeDtypeStruct((B, C, HW), x_nchw.dtype),
        grid=(B,),
        in_specs=[
            pl.BlockSpec((1, C, HW), lambda b: (b, 0, 0)),  # per-batch slab
            pl.BlockSpec((Cr, C), lambda b: (0, 0)),        # grid-invariant weights
            pl.BlockSpec((C, Cr), lambda b: (0, 0)),
        ],
        out_specs=pl.BlockSpec((1, C, HW), lambda b: (b, 0, 0)),
        compiler_params=pltpu.CompilerParams(
            dimension_semantics=("parallel",),              # batch -> both v7x TCs
        ),
    )(x3, w1.astype(jnp.float32), w2.astype(jnp.float32))

    return out.reshape(B, C, H, W)


# ---------------------------------------------------------------------------
# Self-test
# ---------------------------------------------------------------------------
if __name__ == "__main__":
    key = jax.random.PRNGKey(0)
    kx, k1, k2 = jax.random.split(key, 3)

    B, C, H, W = 2, 64, 16, 16
    ratio = 16
    Cr = C // ratio                                          # = 4

    x = jax.random.normal(kx, (B, C, H, W), jnp.float32)
    w1 = jax.random.normal(k1, (Cr, C), jnp.float32) * 0.1   # nn.Linear(C, Cr).weight
    w2 = jax.random.normal(k2, (C, Cr), jnp.float32) * 0.1   # nn.Linear(Cr, C).weight

    fwd = jax.jit(se_forward)
    out = fwd(x, w1, w2)
    jax.block_until_ready(out)

    # Pure-JAX reference (mirrors the PyTorch module exactly).
    m = jnp.mean(x, axis=(2, 3))                             # (B, C)
    h = jnp.maximum(m @ w1.T, 0.0)                           # l1 + ReLU
    s = jax.nn.sigmoid(h @ w2.T)                             # l2 + Sigmoid
    ref = x * s[:, :, None, None]

    assert out.shape == (B, C, H, W), out.shape
    assert bool(jnp.all(jnp.isfinite(out)))
    assert bool(jnp.allclose(out, ref, atol=1e-4, rtol=1e-4))
    print("KERNEL_OK")
</pallas_src>

<mosaic_0001>
module attributes {stable_mosaic.version = 11 : i64} {
  func.func @_se_kernel(%arg0: i32, %arg1: memref<1x64x256xf32, #tpu.memory_space<vmem>>, %arg2: memref<4x64xf32, #tpu.memory_space<vmem>>, %arg3: memref<64x4xf32, #tpu.memory_space<vmem>>, %arg4: memref<1x64x256xf32, #tpu.memory_space<vmem>>) attributes {dimension_semantics = [#tpu.dimension_semantics<parallel>], iteration_bounds = array<i64: 2>, scalar_prefetch = 0 : i64, scratch_operands = 0 : i64, tpu.core_type = #tpu.core_type<tc>, window_params = [{transform_indices = @transform_0, window_bounds = array<i64: 1, 64, 256>}, {pipeline_mode = #tpu.pipeline_mode<synchronous>, transform_indices = @transform_1, window_bounds = array<i64: 4, 64>}, {pipeline_mode = #tpu.pipeline_mode<synchronous>, transform_indices = @transform_2, window_bounds = array<i64: 64, 4>}, {transform_indices = @transform_3, window_bounds = array<i64: 1, 64, 256>}]} {
    %c0 = arith.constant 0 : index
    %c0_0 = arith.constant 0 : index
    %c0_1 = arith.constant 0 : index
    %0 = vector.load %arg1[%c0, %c0_0, %c0_1] : memref<1x64x256xf32, #tpu.memory_space<vmem>>, vector<1x64x256xf32>
    %1 = vector.shape_cast %0 : vector<1x64x256xf32> to vector<64x256xf32>
    %cst = arith.constant dense<0.000000e+00> : vector<64xf32>
    %2 = vector.multi_reduction <add>, %1, %cst [1] : vector<64x256xf32> to vector<64xf32>
    %3 = vector.shape_cast %2 : vector<64xf32> to vector<64x1xf32>
    %cst_2 = arith.constant 2.560000e+02 : f32
    %4 = vector.broadcast %cst_2 : f32 to vector<64x1xf32>
    %5 = arith.divf %3, %4 : vector<64x1xf32>
    %c0_3 = arith.constant 0 : index
    %c0_4 = arith.constant 0 : index
    %6 = vector.load %arg2[%c0_3, %c0_4] : memref<4x64xf32, #tpu.memory_space<vmem>>, vector<4x64xf32>
    %cst_5 = arith.constant dense<0.000000e+00> : vector<4x1xf32>
    %7 = tpu.matmul %6, %5, %cst_5 {dimension_numbers = #tpu.dot_dimension_numbers<[1], [0], [0], [1], [0, 0, 1, 1], [], []>} : vector<4x64xf32>, vector<64x1xf32>, vector<4x1xf32> -> vector<4x1xf32>
    %cst_6 = arith.constant 0.000000e+00 : f32
    %8 = vector.broadcast %cst_6 : f32 to vector<4x1xf32>
    %9 = arith.maximumf %7, %8 : vector<4x1xf32>
    %c0_7 = arith.constant 0 : index
    %c0_8 = arith.constant 0 : index
    %10 = vector.load %arg3[%c0_7, %c0_8] : memref<64x4xf32, #tpu.memory_space<vmem>>, vector<64x4xf32>
    %cst_9 = arith.constant dense<0.000000e+00> : vector<64x1xf32>
    %11 = tpu.matmul %10, %9, %cst_9 {dimension_numbers = #tpu.dot_dimension_numbers<[1], [0], [0], [1], [0, 0, 1, 1], [], []>} : vector<64x4xf32>, vector<4x1xf32>, vector<64x1xf32> -> vector<64x1xf32>
    %12 = arith.negf %11 : vector<64x1xf32>
    %13 = math.exp %12 : vector<64x1xf32>
    %cst_10 = arith.constant 1.000000e+00 : f32
    %14 = vector.broadcast %cst_10 : f32 to vector<64x1xf32>
    %15 = arith.addf %14, %13 : vector<64x1xf32>
    %16 = arith.divf %14, %15 : vector<64x1xf32>
    %17 = vector.broadcast %16 : vector<64x1xf32> to vector<64x256xf32>
    %18 = arith.mulf %1, %17 : vector<64x256xf32>
    %c0_11 = arith.constant 0 : index
    %c0_12 = arith.constant 0 : index
    %c0_13 = arith.constant 0 : index
    %19 = vector.load %arg4[%c0_11, %c0_12, %c0_13] : memref<1x64x256xf32, #tpu.memory_space<vmem>>, vector<1x64x256xf32>
    %20 = vector.shape_cast %19 : vector<1x64x256xf32> to vector<64x256xf32>
    %21 = vector.shape_cast %18 : vector<64x256xf32> to vector<1x64x256xf32>
    tpu.vector_store %arg4[%c0_11, %c0_12, %c0_13], %21 {strides = array<i32>} : memref<1x64x256xf32, #tpu.memory_space<vmem>>, vector<1x64x256xf32>,
    return
  }
  func.func @transform_0(%arg0: i32) -> (i32, i32, i32) {
    %c0_i32 = arith.constant 0 : i32
    %c0_i32_0 = arith.constant 0 : i32
    %c0_i32_1 = arith.constant 0 : i32
    return %arg0, %c0_i32, %c0_i32_0 : i32, i32, i32
  }
  func.func @transform_1(%arg0: i32) -> (i32, i32) {
    %c0_i32 = arith.constant 0 : i32
    %c0_i32_0 = arith.constant 0 : i32
    %c0_i32_1 = arith.constant 0 : i32
    return %c0_i32, %c0_i32_0 : i32, i32
  }
  func.func @transform_2(%arg0: i32) -> (i32, i32) {
    %c0_i32 = arith.constant 0 : i32
    %c0_i32_0 = arith.constant 0 : i32
    %c0_i32_1 = arith.constant 0 : i32
    return %c0_i32, %c0_i32_0 : i32, i32
  }
  func.func @transform_3(%arg0: i32) -> (i32, i32, i32) {
    %c0_i32 = arith.constant 0 : i32
    %c0_i32_0 = arith.constant 0 : i32
    %c0_i32_1 = arith.constant 0 : i32
    return %arg0, %c0_i32, %c0_i32_0 : i32, i32, i32
  }
}

</mosaic_0001>

<llo_original>
// kernel: se_forward.1
$region0: #{se_forward.1}
  #allocation0 [shape = 'u32[]', space=smem, size = 0x4, offset = 0x4, fixed_abs, tag = 'smem constant byte address 0x4 - core index']
  #allocation1 [shape = 'u32[144,128]{1,0:T(1,128)}', space=vmem, size = 0x12000, scoped, tag = 'internal scratch']
  %s0 = inlined_call_operand.vmem [shape: f32[2,64,256], index: 0, kind: input, shape index: {}]
  %s1 = inlined_call_operand.vmem [shape: f32[4,64], index: 1, kind: input, shape index: {}]
  %s2 = inlined_call_operand.vmem [shape: f32[64,4], index: 2, kind: input, shape index: {}]
  %s3 = inlined_call_operand.vmem [shape: f32[2,64,256], index: 3, kind: output, shape index: {}]
  %s4 = sld [smem:[#allocation0]]
  $region45: #{se_forward.1} parent=0
    _
  %s6 = ssub.s32 1, %s4
  %s7 = scalar_select 0, %s6, %s4
  loop: start=0, step=1, limit=4
  $region2: #{se_forward.1} parent=0 // loop_pre_header
    _
  $region3: #{se_forward.1} parent=0 // loop_header
    %s9 = sphi 0, %s13
    %p10 = scmp.ge.s32.totalorder %s9, 4
    %s19 = sphi 0, %s21
    %s22 = sphi 0, %s19
    %s23 = sphi 0, %s22
    %s39 = sphi 0, %s23
    %s43 = sphi 0, %s43
    %s45 = sphi 0, %s43
    %s46 = sphi 0, %s45
    %s60 = sphi 0, %s46
    %s64 = sphi 0, %s64
    %s66 = sphi 0, %s64
    %s67 = sphi 0, %s66
    %s81 = sphi 0, %s67
    %s87 = sphi 0, %s89
    %s90 = sphi 0, %s87
    %s91 = sphi 0, %s90
    %s107 = sphi 0, %s91
  $region4: #{se_forward.1} parent=0 // loop_header_branch
    %12 = sbr.rel (%p10) target = $region8
  $region5: #{se_forward.1} parent=0 // loop_body
    %s14 = ssub.s32 %s9, 1
    %s15 = ssub.s32 %s9, 2
    %s16 = sadd.s32 %s9, 1
    %s17 = ssub.s32 %s9, %s16
    %p18 = scmp.eq.s32.totalorder %s17, 0
    %s20 = sadd.s32 %s19, 1
    %s21 = scalar_select %p18, %s19, %s20
    %p24 = pneg %p18
    %p25 = scmp.eq.s32.totalorder %s9, 1
    %p26 = por %p24, %p25
    %p27 = scmp.ne.s32.totalorder %s19, %s22
    %p28 = scmp.eq.s32.totalorder %s9, 0
    %p29 = por %p27, %p28
    %p30 = scmp.ne.s32.totalorder %s19, %s22
    %p31 = scmp.eq.s32.totalorder %s14, 1
    %p32 = por %p30, %p31
    %p33 = scmp.ne.s32.totalorder %s22, %s23
    %p34 = scmp.eq.s32.totalorder %s14, 0
    %p35 = por %p33, %p34
    %p36 = scmp.ne.s32.totalorder %s22, %s23
    %p37 = scmp.eq.s32.totalorder %s15, 1
    %p38 = por %p36, %p37
    %p40 = scmp.ne.s32.totalorder %s23, %s39
    %p41 = scmp.eq.s32.totalorder %s15, 0
    %p42 = por %p40, %p41
    %s44 = sadd.s32 %s43, 1
    %p47 = scmp.eq.s32.totalorder %s9, 1
    %p48 = scmp.ne.s32.totalorder %s43, %s45
    %p49 = scmp.eq.s32.totalorder %s9, 0
    %p50 = por %p48, %p49
    %p51 = scmp.ne.s32.totalorder %s43, %s45
    %p52 = scmp.eq.s32.totalorder %s14, 1
    %p53 = por %p51, %p52
    %p54 = scmp.ne.s32.totalorder %s45, %s46
    %p55 = scmp.eq.s32.totalorder %s14, 0
    %p56 = por %p54, %p55
    %p57 = scmp.ne.s32.totalorder %s45, %s46
    %p58 = scmp.eq.s32.totalorder %s15, 1
    %p59 = por %p57, %p58
    %p61 = scmp.ne.s32.totalorder %s46, %s60
    %p62 = scmp.eq.s32.totalorder %s15, 0
    %p63 = por %p61, %p62
    %s65 = sadd.s32 %s64, 1
    %p68 = scmp.eq.s32.totalorder %s9, 1
    %p69 = scmp.ne.s32.totalorder %s64, %s66
    %p70 = scmp.eq.s32.totalorder %s9, 0
    %p71 = por %p69, %p70
    %p72 = scmp.ne.s32.totalorder %s64, %s66
    %p73 = scmp.eq.s32.totalorder %s14, 1
    %p74 = por %p72, %p73
    %p75 = scmp.ne.s32.totalorder %s66, %s67
    %p76 = scmp.eq.s32.totalorder %s14, 0
    %p77 = por %p75, %p76
    %p78 = scmp.ne.s32.totalorder %s66, %s67
    %p79 = scmp.eq.s32.totalorder %s15, 1
    %p80 = por %p78, %p79
    %p82 = scmp.ne.s32.totalorder %s67, %s81
    %p83 = scmp.eq.s32.totalorder %s15, 0
    %p84 = por %p82, %p83
    %s85 = ssub.s32 %s9, %s16
    %p86 = scmp.eq.s32.totalorder %s85, 0
    %s88 = sadd.s32 %s87, 1
    %s89 = scalar_select %p86, %s87, %s88
    %p92 = pneg %p86
    %p93 = scmp.eq.s32.totalorder %s9, 1
    %p94 = por %p92, %p93
    %p95 = scmp.ne.s32.totalorder %s87, %s90
    %p96 = scmp.eq.s32.totalorder %s9, 0
    %p97 = por %p95, %p96
    %p98 = scmp.ne.s32.totalorder %s87, %s90
    %p99 = scmp.eq.s32.totalorder %s14, 1
    %p100 = por %p98, %p99
    %p101 = scmp.ne.s32.totalorder %s90, %s91
    %p102 = scmp.eq.s32.totalorder %s14, 0
    %p103 = por %p101, %p102
    %p104 = scmp.ne.s32.totalorder %s90, %s91
    %p105 = scmp.eq.s32.totalorder %s15, 1
    %p106 = por %p104, %p105
    %p108 = scmp.ne.s32.totalorder %s91, %s107
    %p109 = scmp.eq.s32.totalorder %s15, 0
    %p110 = por %p108, %p109
    %p111 = scmp.le.s32.totalorder 1, %s9
    %p112 = scmp.lt.s32.totalorder %s9, 3
    %p113 = pnand %p111, %p112
    %p114 = pneg %p113
    // Predicated region
    $region9: #{se_forward.1} parent=5 // pred_check
      _
    $region10: #{se_forward.1} parent=5 // pred_check_branch
      %116 = sbr.rel (%p113) target = $region12
    $region11: #{se_forward.1} parent=5 // pred_region
      %s117 = ssub.s32 %s9, 1
      // Predicated region
      $region13: #{se_forward.1} parent=11 // pred_check
        %p118 = pneg %p56
      $region14: #{se_forward.1} parent=11 // pred_check_branch
        %120 = sbr.rel (%p118) target = $region16
      $region15: #{se_forward.1} parent=11 // pred_region
        _
      $region16: #{se_forward.1} parent=11 // pred_fallthru
        _
      // Predicated region
      $region17: #{se_forward.1} parent=11 // pred_check
        %p121 = pneg %p77
      $region18: #{se_forward.1} parent=11 // pred_check_branch
        %123 = sbr.rel (%p121) target = $region20
      $region19: #{se_forward.1} parent=11 // pred_region
        _
      $region20: #{se_forward.1} parent=11 // pred_fallthru
        _
    $region12: #{se_forward.1} parent=5 // pred_fallthru
      _
    %p124 = scmp.lt.s32.totalorder %s9, 2
    // Predicated region
    $region21: #{se_forward.1} parent=5 // pred_check
      %p125 = pneg %p124
    $region22: #{se_forward.1} parent=5 // pred_check_branch
      %127 = sbr.rel (%p125) target = $region24
    $region23: #{se_forward.1} parent=5 // pred_region
      // Predicated region
      $region25: #{se_forward.1} parent=23 // pred_check
        %p128 = pneg %p29
      $region26: #{se_forward.1} parent=23 // pred_check_branch
        %130 = sbr.rel (%p128) target = $region28
      $region27: #{se_forward.1} parent=23 // pred_region
        %p131 = scmp.lt.s32.totalorder %s9, 1
        %s132 = scalar_select %p131, %s9, 1
        %s133 = smul.addr %s132, 16
        %s134 = smul.addr %s133, 8
        %s135 = scalar_lea.vmem %s0, %s134
      $region28: #{se_forward.1} parent=23 // pred_fallthru
        _
    $region24: #{se_forward.1} parent=5 // pred_fallthru
      _
    %p136 = scmp.le.s32.totalorder 1, %s9
    %p137 = scmp.lt.s32.totalorder %s9, 3
    %p138 = pnand %p136, %p137
    %p139 = pneg %p138
    // Predicated region
    $region29: #{se_forward.1} parent=5 // pred_check
      _
    $region30: #{se_forward.1} parent=5 // pred_check_branch
      %141 = sbr.rel (%p138) target = $region32
    $region31: #{se_forward.1} parent=5 // pred_region
      %s142 = ssub.s32 %s9, 1
      %p143 = scmp.lt.s32.totalorder %s14, 1
      %s144 = scalar_select %p143, %s14, 1
      %s145 = smul.addr %s144, 16
      %s146 = smul.addr %s145, 8
      %s147 = scalar_lea.vmem %s0, %s146
      %p148 = pneg %p35
      %p149 = pneg %p32
      %p150 = pneg %p56
      %p151 = pneg %p53
      %p152 = pneg %p77
      %p153 = pneg %p74
      %p154 = pneg %p103
      %p155 = pneg %p100
      %p156 = scmp.lt.s32.totalorder %s14, 1
      %s157 = scalar_select %p156, %s14, 1
      %s158 = smul.addr %s157, 16
      %s159 = smul.addr %s158, 8
      %s160 = scalar_lea.vmem %s3, %s159
      %p161 = scmp.lt.s32.totalorder %s14, 1
      %s162 = scalar_select %p161, %s14, 1
      %s163 = smul.addr %s162, 16
      %s164 = smul.addr %s163, 8
      %s165 = scalar_lea.vmem %s0, %s164
      %p166 = scmp.lt.s32.totalorder %s14, 1
      %s167 = scalar_select %p166, %s14, 1
      %s168 = smul.addr %s167, 16
      %s169 = smul.addr %s168, 8
      %s170 = scalar_lea.vmem %s3, %s169
      %v171 = vld [vmem:[%s165] sm:$0xff]
      %v172 = vld [vmem:[%s165 + $0x8] sm:$0xff]
      %v173 = vld [vmem:[%s165 + $0x10] sm:$0xff]
      %v174 = vld [vmem:[%s165 + $0x18] sm:$0xff]
      %v175 = vld [vmem:[%s165 + $0x20] sm:$0xff]
      %v176 = vld [vmem:[%s165 + $0x28] sm:$0xff]
      %v177 = vld [vmem:[%s165 + $0x30] sm:$0xff]
      %v178 = vld [vmem:[%s165 + $0x38] sm:$0xff]
      %v179 = vld [vmem:[%s165 + $0x40] sm:$0xff]
      %v180 = vld [vmem:[%s165 + $0x48] sm:$0xff]
      %v181 = vld [vmem:[%s165 + $0x50] sm:$0xff]
      %v182 = vld [vmem:[%s165 + $0x58] sm:$0xff]
      %v183 = vld [vmem:[%s165 + $0x60] sm:$0xff]
      %v184 = vld [vmem:[%s165 + $0x68] sm:$0xff]
      %v185 = vld [vmem:[%s165 + $0x70] sm:$0xff]
      %v186 = vld [vmem:[%s165 + $0x78] sm:$0xff]
      %v187 = vadd.f32 %v171, %v172
      %188 = vadd.xlane.f32.xlu0 %v187
      %v189 = vpop.xlane.xlu0 %188
      %v190 = vadd.f32 %v173, %v174
      %191 = vadd.xlane.f32.xlu0 %v190
      %v192 = vpop.xlane.xlu0 %191
      %v193 = vadd.f32 %v175, %v176
      %194 = vadd.xlane.f32.xlu0 %v193
      %v195 = vpop.xlane.xlu0 %194
      %v196 = vadd.f32 %v177, %v178
      %197 = vadd.xlane.f32.xlu0 %v196
      %v198 = vpop.xlane.xlu0 %197
      %v199 = vadd.f32 %v179, %v180
      %200 = vadd.xlane.f32.xlu0 %v199
      %v201 = vpop.xlane.xlu0 %200
      %v202 = vadd.f32 %v181, %v182
      %203 = vadd.xlane.f32.xlu0 %v202
      %v204 = vpop.xlane.xlu0 %203
      %v205 = vadd.f32 %v183, %v184
      %206 = vadd.xlane.f32.xlu0 %v205
      %v207 = vpop.xlane.xlu0 %206
      %v208 = vadd.f32 %v185, %v186
      %209 = vadd.xlane.f32.xlu0 %v208
      %v210 = vpop.xlane.xlu0 %209
      %v211 = vrcp.pop 256.0
      %v212 = vmul.f32 %v189, %v211
      %v213 = vmul.f32 %v192, %v211
      %v214 = vmul.f32 %v195, %v211
      %v215 = vmul.f32 %v198, %v211
      %v216 = vmul.f32 %v201, %v211
      %v217 = vmul.f32 %v204, %v211
      %v218 = vmul.f32 %v207, %v211
      %v219 = vmul.f32 %v210, %v211
      %v220 = vld [vmem:[%s1] sm:$0xf]
      %vm221 = vcmask 523264
      %v223 = vsel %vm221, %v220, 0
      %225 = vmatprep.subr.mxu0 0.0
      %226 = vmatpush1.msra.mxu0 0.0
      %227 = vmatprep.subr.mxu0 0.0
      %228 = vmatpush1.msra.mxu0 0.0
      %229 = vmatprep.subr.mxu0 0.0
      %230 = vmatpush1.msra.mxu0 0.0
      %231 = vmatprep.subr.mxu0 0.0
      %232 = vmatpush1.msra.mxu0 0.0
      %233 = vmatprep.subr.mxu0 0.0
      %234 = vmatpush1.msra.mxu0 0.0
      %235 = vmatprep.subr.mxu0 0.0
      %236 = vmatpush1.msra.mxu0 0.0
      %237 = vmatprep.subr.mxu0 0.0
      %238 = vmatpush1.msra.mxu0 0.0
      %239 = vmatprep.subr.mxu0 0.0
      %240 = vmatpush1.msra.mxu0 0.0
      %241 = vmatprep.subr.mxu0 0.0
      %242 = vmatpush1.msra.mxu0 %v219
      %243 = vmatprep.subr.mxu0 0.0
      %244 = vmatpush1.msra.mxu0 %v218
      %245 = vmatprep.subr.mxu0 0.0
      %246 = vmatpush1.msra.mxu0 %v217
      %247 = vmatprep.subr.mxu0 0.0
      %248 = vmatpush1.msra.mxu0 %v216
      %249 = vmatprep.subr.mxu0 0.0
      %250 = vmatpush1.msra.mxu0 %v215
      %251 = vmatprep.subr.mxu0 0.0
      %252 = vmatpush1.msra.mxu0 %v214
      %253 = vmatprep.subr.mxu0 0.0
      %254 = vmatpush1.msra.mxu0 %v213
      %255 = vmatprep.subr.mxu0 0.0
      %256 = vmatpush1.msra.mxu0 %v212
      %257 = vmatprep.subr.mxu0 0.0
      %258 = vmatpush2.msra.mxu0 0.0
      %259 = vmatprep.subr.mxu0 0.0
      %260 = vmatpush2.msra.mxu0 0.0
      %261 = vmatprep.subr.mxu0 0.0
      %262 = vmatpush2.msra.mxu0 0.0
      %263 = vmatprep.subr.mxu0 0.0
      %264 = vmatpush2.msra.mxu0 0.0
      %265 = vmatprep.subr.mxu0 0.0
      %266 = vmatpush2.msra.mxu0 0.0
      %267 = vmatprep.subr.mxu0 0.0
      %268 = vmatpush2.msra.mxu0 0.0
      %269 = vmatprep.subr.mxu0 0.0
      %270 = vmatpush2.msra.mxu0 0.0
      %271 = vmatprep.subr.mxu0 0.0
      %272 = vmatpush2.msra.mxu0 0.0
      %273 = vmatprep.subr.mxu0 0.0
      %274 = vmatpush2.msra.mxu0 0.0
      %275 = vmatprep.subr.mxu0 0.0
      %276 = vmatpush2.msra.mxu0 0.0
      %277 = vmatprep.subr.mxu0 0.0
      %278 = vmatpush2.msra.mxu0 0.0
      %279 = vmatprep.subr.mxu0 0.0
      %280 = vmatpush2.msra.mxu0 0.0
      %281 = vmatprep.subr.mxu0 0.0
      %282 = vmatpush2.msra.mxu0 0.0
      %283 = vmatprep.subr.mxu0 0.0
      %284 = vmatpush2.msra.mxu0 0.0
      %285 = vmatprep.subr.mxu0 0.0
      %286 = vmatpush2.msra.mxu0 0.0
      %287 = vmatprep.subr.mxu0 0.0
      %288 = vmatpush2.msra.mxu0 0.0
      %289 = vmatprep.mubr.f32.mxu0 0.0
      %290 = vmatmul.mubr.f32.gmra.mxu0 %v223
      %v291 = vpop.f32.mrf.mxu0
      %v292 = vadd.f32 0.0, %v291
      %v293 = vpop.f32.mrf.mxu0
      %294 = vdwg.mxu0
      %v295 = vmax.f32 %v292, 0.0
      %v296 = vld [vmem:[%s2] sm:$0xff]
      %v297 = vld [vmem:[%s2 + $0x8] sm:$0xff]
      %v298 = vld [vmem:[%s2 + $0x10] sm:$0xff]
      %v299 = vld [vmem:[%s2 + $0x18] sm:$0xff]
      %v300 = vld [vmem:[%s2 + $0x20] sm:$0xff]
      %v301 = vld [vmem:[%s2 + $0x28] sm:$0xff]
      %v302 = vld [vmem:[%s2 + $0x30] sm:$0xff]
      %v303 = vld [vmem:[%s2 + $0x38] sm:$0xff]
      %vm304 = vcmask 31744
      %v306 = vsel %vm304, %v296, 0
      %v309 = vsel %vm304, %v297, 0
      %v312 = vsel %vm304, %v298, 0
      %v315 = vsel %vm304, %v299, 0
      %v318 = vsel %vm304, %v300, 0
      %v321 = vsel %vm304, %v301, 0
      %v324 = vsel %vm304, %v302, 0
      %v327 = vsel %vm304, %v303, 0
      %vm329 = vcmask 1043456
      %v331 = vsel %vm329, %v295, 0
      %333 = vmatprep.subr.mxu0 0.0
      %334 = vmatpush1.msra.mxu0 0.0
      %335 = vmatprep.subr.mxu0 0.0
      %336 = vmatpush1.msra.mxu0 0.0
      %337 = vmatprep.subr.mxu0 0.0
      %338 = vmatpush1.msra.mxu0 0.0
      %339 = vmatprep.subr.mxu0 0.0
      %340 = vmatpush1.msra.mxu0 0.0
      %341 = vmatprep.subr.mxu0 0.0
      %342 = vmatpush1.msra.mxu0 0.0
      %343 = vmatprep.subr.mxu0 0.0
      %344 = vmatpush1.msra.mxu0 0.0
      %345 = vmatprep.subr.mxu0 0.0
      %346 = vmatpush1.msra.mxu0 0.0
      %347 = vmatprep.subr.mxu0 0.0
      %348 = vmatpush1.msra.mxu0 0.0
      %349 = vmatprep.subr.mxu0 0.0
      %350 = vmatpush1.msra.mxu0 0.0
      %351 = vmatprep.subr.mxu0 0.0
      %352 = vmatpush1.msra.mxu0 0.0
      %353 = vmatprep.subr.mxu0 0.0
      %354 = vmatpush1.msra.mxu0 0.0
      %355 = vmatprep.subr.mxu0 0.0
      %356 = vmatpush1.msra.mxu0 0.0
      %357 = vmatprep.subr.mxu0 0.0
      %358 = vmatpush1.msra.mxu0 0.0
      %359 = vmatprep.subr.mxu0 0.0
      %360 = vmatpush1.msra.mxu0 0.0
      %361 = vmatprep.subr.mxu0 0.0
      %362 = vmatpush1.msra.mxu0 0.0
      %363 = vmatprep.subr.mxu0 0.0
      %364 = vmatpush1.msra.mxu0 %v331
      %365 = vmatprep.subr.mxu0 0.0
      %366 = vmatpush2.msra.mxu0 0.0
      %367 = vmatprep.subr.mxu0 0.0
      %368 = vmatpush2.msra.mxu0 0.0
      %369 = vmatprep.subr.mxu0 0.0
      %370 = vmatpush2.msra.mxu0 0.0
      %371 = vmatprep.subr.mxu0 0.0
      %372 = vmatpush2.msra.mxu0 0.0
      %373 = vmatprep.subr.mxu0 0.0
      %374 = vmatpush2.msra.mxu0 0.0
      %375 = vmatprep.subr.mxu0 0.0
      %376 = vmatpush2.msra.mxu0 0.0
      %377 = vmatprep.subr.mxu0 0.0
      %378 = vmatpush2.msra.mxu0 0.0
      %379 = vmatprep.subr.mxu0 0.0
      %380 = vmatpush2.msra.mxu0 0.0
      %381 = vmatprep.subr.mxu0 0.0
      %382 = vmatpush2.msra.mxu0 0.0
      %383 = vmatprep.subr.mxu0 0.0
      %384 = vmatpush2.msra.mxu0 0.0
      %385 = vmatprep.subr.mxu0 0.0
      %386 = vmatpush2.msra.mxu0 0.0
      %387 = vmatprep.subr.mxu0 0.0
      %388 = vmatpush2.msra.mxu0 0.0
      %389 = vmatprep.subr.mxu0 0.0
      %390 = vmatpush2.msra.mxu0 0.0
      %391 = vmatprep.subr.mxu0 0.0
      %392 = vmatpush2.msra.mxu0 0.0
      %393 = vmatprep.subr.mxu0 0.0
      %394 = vmatpush2.msra.mxu0 0.0
      %395 = vmatprep.subr.mxu0 0.0
      %396 = vmatpush2.msra.mxu0 0.0
      %397 = vmatprep.mubr.f32.mxu0 0.0
      %398 = vmatmul.mubr.f32.gmra.mxu0 %v306
      %v399 = vpop.f32.mrf.mxu0
      %v400 = vadd.f32 0.0, %v399
      %v401 = vpop.f32.mrf.mxu0
      %402 = vmatprep.mubr.f32.mxu0 0.0
      %403 = vmatmul.mubr.f32.gmra.mxu0 %v309
      %v404 = vpop.f32.mrf.mxu0
      %v405 = vadd.f32 0.0, %v404
      %v406 = vpop.f32.mrf.mxu0
      %407 = vmatprep.mubr.f32.mxu0 0.0
      %408 = vmatmul.mubr.f32.gmra.mxu0 %v312
      %v409 = vpop.f32.mrf.mxu0
      %v410 = vadd.f32 0.0, %v409
      %v411 = vpop.f32.mrf.mxu0
      %412 = vmatprep.mubr.f32.mxu0 0.0
      %413 = vmatmul.mubr.f32.gmra.mxu0 %v315
      %v414 = vpop.f32.mrf.mxu0
      %v415 = vadd.f32 0.0, %v414
      %v416 = vpop.f32.mrf.mxu0
      %417 = vmatprep.mubr.f32.mxu0 0.0
      %418 = vmatmul.mubr.f32.gmra.mxu0 %v318
      %v419 = vpop.f32.mrf.mxu0
      %v420 = vadd.f32 0.0, %v419
      %v421 = vpop.f32.mrf.mxu0
      %422 = vmatprep.mubr.f32.mxu0 0.0
      %423 = vmatmul.mubr.f32.gmra.mxu0 %v321
      %v424 = vpop.f32.mrf.mxu0
      %v425 = vadd.f32 0.0, %v424
      %v426 = vpop.f32.mrf.mxu0
      %427 = vmatprep.mubr.f32.mxu0 0.0
      %428 = vmatmul.mubr.f32.gmra.mxu0 %v324
      %v429 = vpop.f32.mrf.mxu0
      %v430 = vadd.f32 0.0, %v429
      %v431 = vpop.f32.mrf.mxu0
      %432 = vmatprep.mubr.f32.mxu0 0.0
      %433 = vmatmul.mubr.f32.gmra.mxu0 %v327
      %v434 = vpop.f32.mrf.mxu0
      %v435 = vadd.f32 0.0, %v434
      %v436 = vpop.f32.mrf.mxu0
      %437 = vdwg.mxu0
      %v438 = vxor.u32 %v400, 2147483648
      %v439 = vxor.u32 %v405, 2147483648
      %v440 = vxor.u32 %v410, 2147483648
      %v441 = vxor.u32 %v415, 2147483648
      %v442 = vxor.u32 %v420, 2147483648
      %v443 = vxor.u32 %v425, 2147483648
      %v444 = vxor.u32 %v430, 2147483648
      %v445 = vxor.u32 %v435, 2147483648
      %v446 = vmul.f32 %v438, 1.442695
      %v447 = vpow.pop %v446
      %v448 = vmul.f32 %v439, 1.442695
      %v449 = vpow.pop %v448
      %v450 = vmul.f32 %v440, 1.442695
      %v451 = vpow.pop %v450
      %v452 = vmul.f32 %v441, 1.442695
      %v453 = vpow.pop %v452
      %v454 = vmul.f32 %v442, 1.442695
      %v455 = vpow.pop %v454
      %v456 = vmul.f32 %v443, 1.442695
      %v457 = vpow.pop %v456
      %v458 = vmul.f32 %v444, 1.442695
      %v459 = vpow.pop %v458
      %v460 = vmul.f32 %v445, 1.442695
      %v461 = vpow.pop %v460
      %v462 = vadd.f32 %v447, 1.0
      %v463 = vadd.f32 %v449, 1.0
      %v464 = vadd.f32 %v451, 1.0
      %v465 = vadd.f32 %v453, 1.0
      %v466 = vadd.f32 %v455, 1.0
      %v467 = vadd.f32 %v457, 1.0
      %v468 = vadd.f32 %v459, 1.0
      %v469 = vadd.f32 %v461, 1.0
      %v470 = vrcp.pop %v462
      %v471 = vmul.f32 1.0, %v470
      %v472 = vrcp.pop %v463
      %v473 = vmul.f32 1.0, %v472
      %v474 = vrcp.pop %v464
      %v475 = vmul.f32 1.0, %v474
      %v476 = vrcp.pop %v465
      %v477 = vmul.f32 1.0, %v476
      %v478 = vrcp.pop %v466
      %v479 = vmul.f32 1.0, %v478
      %v480 = vrcp.pop %v467
      %v481 = vmul.f32 1.0, %v480
      %v482 = vrcp.pop %v468
      %v483 = vmul.f32 1.0, %v482
      %v484 = vrcp.pop %v469
      %v485 = vmul.f32 1.0, %v484
      %487 = vset.pattern.permute.xlu0 0
      %488 = vperm.xlu0 %487, %v471
      %v489 = vpop.permute.xlu0 %488
      %492 = vset.pattern.permute.xlu0 0
      %493 = vperm.xlu0 %492, %v473
      %v494 = vpop.permute.xlu0 %493
      %497 = vset.pattern.permute.xlu0 0
      %498 = vperm.xlu0 %497, %v475
      %v499 = vpop.permute.xlu0 %498
      %502 = vset.pattern.permute.xlu0 0
      %503 = vperm.xlu0 %502, %v477
      %v504 = vpop.permute.xlu0 %503
      %507 = vset.pattern.permute.xlu0 0
      %508 = vperm.xlu0 %507, %v479
      %v509 = vpop.permute.xlu0 %508
      %512 = vset.pattern.permute.xlu0 0
      %513 = vperm.xlu0 %512, %v481
      %v514 = vpop.permute.xlu0 %513
      %517 = vset.pattern.permute.xlu0 0
      %518 = vperm.xlu0 %517, %v483
      %v519 = vpop.permute.xlu0 %518
      %522 = vset.pattern.permute.xlu0 0
      %523 = vperm.xlu0 %522, %v485
      %v524 = vpop.permute.xlu0 %523
      %v526 = vmul.f32 %v171, %v489
      %v527 = vmul.f32 %v172, %v489
      %v528 = vmul.f32 %v173, %v494
      %v529 = vmul.f32 %v174, %v494
      %v530 = vmul.f32 %v175, %v499
      %v531 = vmul.f32 %v176, %v499
      %v532 = vmul.f32 %v177, %v504
      %v533 = vmul.f32 %v178, %v504
      %v534 = vmul.f32 %v179, %v509
      %v535 = vmul.f32 %v180, %v509
      %v536 = vmul.f32 %v181, %v514
      %v537 = vmul.f32 %v182, %v514
      %v538 = vmul.f32 %v183, %v519
      %v539 = vmul.f32 %v184, %v519
      %v540 = vmul.f32 %v185, %v524
      %v541 = vmul.f32 %v186, %v524
      %542 = vst [vmem:[%s170] sm:$0xff] %v526
      %543 = vst [vmem:[%s170 + $0x8] sm:$0xff] %v527
      %544 = vst [vmem:[%s170 + $0x10] sm:$0xff] %v528
      %545 = vst [vmem:[%s170 + $0x18] sm:$0xff] %v529
      %546 = vst [vmem:[%s170 + $0x20] sm:$0xff] %v530
      %547 = vst [vmem:[%s170 + $0x28] sm:$0xff] %v531
      %548 = vst [vmem:[%s170 + $0x30] sm:$0xff] %v532
      %549 = vst [vmem:[%s170 + $0x38] sm:$0xff] %v533
      %550 = vst [vmem:[%s170 + $0x40] sm:$0xff] %v534
      %551 = vst [vmem:[%s170 + $0x48] sm:$0xff] %v535
      %552 = vst [vmem:[%s170 + $0x50] sm:$0xff] %v536
      %553 = vst [vmem:[%s170 + $0x58] sm:$0xff] %v537
      %554 = vst [vmem:[%s170 + $0x60] sm:$0xff] %v538
      %555 = vst [vmem:[%s170 + $0x68] sm:$0xff] %v539
      %556 = vst [vmem:[%s170 + $0x70] sm:$0xff] %v540
      %557 = vst [vmem:[%s170 + $0x78] sm:$0xff] %v541
      %p558 = scmp.lt.s32.totalorder %s14, 1
      %s559 = scalar_select %p558, %s14, 1
      %s560 = smul.addr %s559, 16
      %s561 = smul.addr %s560, 8
      %s562 = scalar_lea.vmem %s3, %s561
      // Predicated region
      $region33: #{se_forward.1} parent=31 // pred_check
        %p563 = pneg %p100
      $region34: #{se_forward.1} parent=31 // pred_check_branch
        %565 = sbr.rel (%p563) target = $region36
      $region35: #{se_forward.1} parent=31 // pred_region
        _
      $region36: #{se_forward.1} parent=31 // pred_fallthru
        _
    $region32: #{se_forward.1} parent=5 // pred_fallthru
      _
    %p566 = scmp.le.s32.totalorder 2, %s9
    // Predicated region
    $region37: #{se_forward.1} parent=5 // pred_check
      %p567 = pneg %p566
    $region38: #{se_forward.1} parent=5 // pred_check_branch
      %569 = sbr.rel (%p567) target = $region40
    $region39: #{se_forward.1} parent=5 // pred_region
      %s570 = ssub.s32 %s9, 2
      // Predicated region
      $region41: #{se_forward.1} parent=39 // pred_check
        %p571 = pneg %p106
      $region42: #{se_forward.1} parent=39 // pred_check_branch
        %573 = sbr.rel (%p571) target = $region44
      $region43: #{se_forward.1} parent=39 // pred_region
        %p574 = scmp.lt.s32.totalorder %s15, 1
        %s575 = scalar_select %p574, %s15, 1
        %s576 = smul.addr %s575, 16
        %s577 = smul.addr %s576, 8
        %s578 = scalar_lea.vmem %s3, %s577
      $region44: #{se_forward.1} parent=39 // pred_fallthru
        _
    $region40: #{se_forward.1} parent=5 // pred_fallthru
      _
  $region6: #{se_forward.1} parent=0 // loop_footer
    %s13 = sadd.s32 1, %s9
  $region7: #{se_forward.1} parent=0 // loop_footer_branch
    %8 = sbr.rel target = $region3
  $region8: #{se_forward.1} parent=0 // loop_exit
    _

</llo_original>
